<compile_context>
chip_gen: v7x
topology: tpu7x:2x2x1
jax: 0.10.0
libtpu: 0.0.40
codegen_flags: <defaults>
</compile_context>

<pallas_src>
import functools

import jax
import jax.numpy as jnp
from jax.experimental import pallas as pl
from jax.experimental.pallas import tpu as pltpu

LANES = 128
SUBLANES = 8
BLOCK_ROWS = 8192                      # (8192, 128) f32 tile = 4 MiB / input / buffer
VMEM_LIMIT_BYTES = 32 * 1024 * 1024    # fits 16 MiB of double-buffered inputs + slack
N_CORE_SPLIT = 2                       # shard row-blocks across 2 TCs on v7x


def _dice_sums_kernel(x_ref, t_ref, sums_ref, acc_prod, acc_card, *,
                      total_rows, block_rows, blocks_per_split, n_split):
    """Per-core partial sums of sigmoid(x)*t and sigmoid(x)+t over row blocks."""
    c = pl.program_id(0)            # core-split index ("parallel")
    j = pl.program_id(1)            # row-block index within this split ("arbitrary")

    @pl.when(j == 0)
    def _():
        acc_prod[...] = jnp.zeros_like(acc_prod)
        acc_card[...] = jnp.zeros_like(acc_card)

    x = x_ref[...].astype(jnp.float32)
    t = t_ref[...].astype(jnp.float32)
    # sigmoid via tanh: one EUP op per element instead of exp + reciprocal.
    probs = 0.5 * (jnp.tanh(0.5 * x) + 1.0)
    prod = probs * t
    card = probs + t

    def _accumulate(p, q):
        if block_rows % SUBLANES == 0:
            # Reduce the block only down to vreg shape (pure VPU adds); keep the
            # running sums as (8, 128) vregs in VMEM.
            groups = block_rows // SUBLANES
            acc_prod[...] += p.reshape(groups, SUBLANES, LANES).sum(axis=0)
            acc_card[...] += q.reshape(groups, SUBLANES, LANES).sum(axis=0)
        else:
            # Tiny inputs (rows not a multiple of 8): single partial block.
            acc_prod[0:1, :] += p.sum(axis=0, keepdims=True)
            acc_card[0:1, :] += q.sum(axis=0, keepdims=True)

    # Static check: does the (n_split * blocks_per_split) x block_rows grid
    # cover exactly total_rows?  If so, no masking path is ever emitted.
    if n_split * blocks_per_split * block_rows != total_rows:
        g = c * blocks_per_split + j            # logical (unclamped) block index
        block_end = (g + 1) * block_rows

        @pl.when(block_end <= total_rows)       # fully-valid block: no mask ops
        def _():
            _accumulate(prod, card)

        @pl.when(block_end > total_rows)        # ragged last block / clamped block
        def _():
            # Rows >= `valid` hold undefined or duplicated (clamped-DMA) data.
            # jnp.where is a select, so garbage in the masked region is harmless;
            # `valid` <= 0 masks the whole block (redundant clamped blocks).
            valid = total_rows - g * block_rows
            row_ids = jax.lax.broadcasted_iota(jnp.int32, (block_rows, LANES), 0)
            keep = row_ids < valid
            _accumulate(jnp.where(keep, prod, 0.0), jnp.where(keep, card, 0.0))
    else:
        _accumulate(prod, card)

    @pl.when(j == pl.num_programs(1) - 1)
    def _():
        # Single cross-lane/sublane reduction per core, paid once.
        sums_ref[0, 0] = jnp.sum(acc_prod[...])
        sums_ref[0, 1] = jnp.sum(acc_card[...])


def _dice_sums(x2, t2, *, block_rows):
    rows = x2.shape[0]
    num_blocks = pl.cdiv(rows, block_rows)
    n_split = N_CORE_SPLIT if num_blocks >= N_CORE_SPLIT else 1
    blocks_per_split = pl.cdiv(num_blocks, n_split)
    grid = (n_split, blocks_per_split)

    def in_map(c, j):
        # Clamp so redundant trailing blocks re-read the last valid block;
        # the kernel masks their contribution to zero.
        return (jnp.minimum(c * blocks_per_split + j, num_blocks - 1), 0)

    kernel = functools.partial(
        _dice_sums_kernel,
        total_rows=rows, block_rows=block_rows,
        blocks_per_split=blocks_per_split, n_split=n_split)

    return pl.pallas_call(
        kernel,
        out_shape=jax.ShapeDtypeStruct((n_split, 2), jnp.float32),
        grid_spec=pltpu.PrefetchScalarGridSpec(
            num_scalar_prefetch=0,
            grid=grid,
            in_specs=[
                pl.BlockSpec((block_rows, LANES), in_map),
                pl.BlockSpec((block_rows, LANES), in_map),
            ],
            out_specs=pl.BlockSpec((1, 2), lambda c, j: (c, 0),
                                   memory_space=pltpu.SMEM),
            scratch_shapes=[
                pltpu.VMEM((SUBLANES, LANES), jnp.float32),
                pltpu.VMEM((SUBLANES, LANES), jnp.float32),
            ],
        ),
        compiler_params=pltpu.CompilerParams(
            # Leading axis shards across TensorCores (v7x 2-TC; no-op on 1-TC
            # chips); inner axis is the sequential reduction.
            dimension_semantics=("parallel", "arbitrary"),
            vmem_limit_bytes=VMEM_LIMIT_BYTES,
            # Let XLA fuse the (ragged-case) prefix slice / narrow-dtype cast
            # into the custom-call inputs instead of materializing them.
            allow_input_fusion=[True, True],
        ),
    )(x2, t2)


@functools.partial(jax.jit, static_argnames=("smooth", "block_rows"))
def dice_loss(logits, targets, smooth=1.0, block_rows=BLOCK_ROWS):
    """Matches DiceLoss.forward: 1 - (2*I + s) / (C + s)."""
    x = logits.reshape(-1)                       # torch .view(-1)
    t = targets.reshape(-1)
    if t.dtype == jnp.bool_:
        t = t.astype(jnp.int8)                   # narrow HBM dtype; f32 only in-kernel

    n = x.shape[0]
    rows = n // LANES
    n_main = rows * LANES

    intersection = jnp.float32(0.0)
    cardinality = jnp.float32(0.0)

    if rows > 0:
        br = block_rows if rows >= block_rows else rows
        x_main = x if n_main == n else x[:n_main]
        t_main = t if n_main == n else t[:n_main]
        sums = _dice_sums(x_main.reshape(rows, LANES),
                          t_main.reshape(rows, LANES),
                          block_rows=br)
        intersection = intersection + jnp.sum(sums[:, 0])
        cardinality = cardinality + jnp.sum(sums[:, 1])

    if n_main < n:
        # Sub-128-element tail: negligible work, handled in plain JAX.
        xt = x[n_main:].astype(jnp.float32)
        tt = t[n_main:].astype(jnp.float32)
        pt = jax.nn.sigmoid(xt)
        intersection = intersection + jnp.sum(pt * tt)
        cardinality = cardinality + jnp.sum(pt + tt)

    dice_score = (2.0 * intersection + smooth) / (cardinality + smooth)
    return 1.0 - dice_score


def _reference(logits, targets, smooth=1.0):
    probs = jax.nn.sigmoid(logits.astype(jnp.float32)).reshape(-1)
    t = targets.astype(jnp.float32).reshape(-1)
    inter = jnp.sum(probs * t)
    card = jnp.sum(probs + t)
    return 1.0 - (2.0 * inter + smooth) / (card + smooth)


if __name__ == "__main__":
    key = jax.random.PRNGKey(0)
    k1, k2, k3, k4, k5, k6 = jax.random.split(key, 6)

    # 1) NCHW like the PyTorch pipeline: batch=2, channels=4, spatial=16x16.
    logits = jax.random.normal(k1, (2, 4, 16, 16), dtype=jnp.float32)
    targets = (jax.random.uniform(k2, (2, 4, 16, 16)) > 0.5).astype(jnp.float32)
    loss = dice_loss(logits, targets, smooth=1.0)
    jax.block_until_ready(loss)
    ref = _reference(logits, targets, smooth=1.0)
    assert jnp.allclose(loss, ref, atol=1e-5, rtol=1e-5), (loss, ref)

    # 2) Non-lane-aligned shape: odd-row accumulate path + plain-JAX tail.
    logits2 = jax.random.normal(k3, (2, 3, 20, 20), dtype=jnp.float32)
    targets2 = (jax.random.uniform(k4, (2, 3, 20, 20)) > 0.5).astype(jnp.float32)
    loss2 = dice_loss(logits2, targets2, smooth=1.0)
    jax.block_until_ready(loss2)
    ref2 = _reference(logits2, targets2, smooth=1.0)
    assert jnp.allclose(loss2, ref2, atol=1e-5, rtol=1e-5), (loss2, ref2)

    # 3) Regression test for the multi-block + core-split + masked-partial-block
    #    path: rows=45 with block_rows=16 -> grid (2, 2); block 2 is ragged
    #    (13 valid rows) and the 4th grid step is a fully-masked clamped block.
    logits3 = jax.random.normal(k5, (1, 1, 45, 128), dtype=jnp.float32)
    targets3 = (jax.random.uniform(k6, (1, 1, 45, 128)) > 0.5).astype(jnp.float32)
    loss3 = dice_loss(logits3, targets3, smooth=1.0, block_rows=16)
    jax.block_until_ready(loss3)
    ref3 = _reference(logits3, targets3, smooth=1.0)
    assert jnp.allclose(loss3, ref3, atol=1e-5, rtol=1e-5), (loss3, ref3)

    print("KERNEL_OK")
</pallas_src>

<mosaic_0001>
module attributes {stable_mosaic.version = 11 : i64} {
  func.func @_dice_sums_kernel(%arg0: i32, %arg1: i32, %arg2: memref<16x128xf32, #tpu.memory_space<vmem>>, %arg3: memref<16x128xf32, #tpu.memory_space<vmem>>, %arg4: memref<1x2xf32, #tpu.memory_space<smem>>, %arg5: memref<8x128xf32, #tpu.memory_space<vmem>>, %arg6: memref<8x128xf32, #tpu.memory_space<vmem>>) attributes {dimension_semantics = [#tpu.dimension_semantics<parallel>, #tpu.dimension_semantics<arbitrary>], iteration_bounds = array<i64: 1, 1>, scalar_prefetch = 0 : i64, scratch_operands = 2 : i64, tpu.core_type = #tpu.core_type<tc>, window_params = [{transform_indices = @transform_0, window_bounds = array<i64: 16, 128>}, {transform_indices = @transform_1, window_bounds = array<i64: 16, 128>}, {transform_indices = @transform_2, window_bounds = array<i64: 1, 2>}]} {
    %c0_i32 = arith.constant 0 : i32
    %0 = arith.cmpi eq, %arg1, %c0_i32 : i32
    %1 = arith.extui %0 : i1 to i32
    %c0_i32_0 = arith.constant 0 : i32
    %2 = arith.cmpi ne, %1, %c0_i32_0 : i32
    scf.if %2 {
      %cst_18 = arith.constant 0.000000e+00 : f32
      %27 = vector.broadcast %cst_18 : f32 to vector<8x128xf32>
      %c0_19 = arith.constant 0 : index
      %c0_20 = arith.constant 0 : index
      %28 = vector.load %arg5[%c0_19, %c0_20] : memref<8x128xf32, #tpu.memory_space<vmem>>, vector<8x128xf32>
      tpu.vector_store %arg5[%c0_19, %c0_20], %27 {strides = array<i32>} : memref<8x128xf32, #tpu.memory_space<vmem>>, vector<8x128xf32>,
      %cst_21 = arith.constant 0.000000e+00 : f32
      %29 = vector.broadcast %cst_21 : f32 to vector<8x128xf32>
      %c0_22 = arith.constant 0 : index
      %c0_23 = arith.constant 0 : index
      %30 = vector.load %arg6[%c0_22, %c0_23] : memref<8x128xf32, #tpu.memory_space<vmem>>, vector<8x128xf32>
      tpu.vector_store %arg6[%c0_22, %c0_23], %29 {strides = array<i32>} : memref<8x128xf32, #tpu.memory_space<vmem>>, vector<8x128xf32>,
    } else {
    }
    %c0 = arith.constant 0 : index
    %c0_1 = arith.constant 0 : index
    %3 = vector.load %arg2[%c0, %c0_1] : memref<16x128xf32, #tpu.memory_space<vmem>>, vector<16x128xf32>
    %c0_2 = arith.constant 0 : index
    %c0_3 = arith.constant 0 : index
    %4 = vector.load %arg3[%c0_2, %c0_3] : memref<16x128xf32, #tpu.memory_space<vmem>>, vector<16x128xf32>
    %cst = arith.constant 5.000000e-01 : f32
    %5 = vector.broadcast %cst : f32 to vector<16x128xf32>
    %6 = arith.mulf %5, %3 : vector<16x128xf32>
    %7 = math.tanh %6 : vector<16x128xf32>
    %cst_4 = arith.constant 1.000000e+00 : f32
    %8 = vector.broadcast %cst_4 : f32 to vector<16x128xf32>
    %9 = arith.addf %7, %8 : vector<16x128xf32>
    %cst_5 = arith.constant 5.000000e-01 : f32
    %10 = vector.broadcast %cst_5 : f32 to vector<16x128xf32>
    %11 = arith.mulf %10, %9 : vector<16x128xf32>
    %12 = arith.mulf %11, %4 : vector<16x128xf32>
    %13 = arith.addf %11, %4 : vector<16x128xf32>
    %c0_6 = arith.constant 0 : index
    %c0_7 = arith.constant 0 : index
    %14 = vector.load %arg5[%c0_6, %c0_7] : memref<8x128xf32, #tpu.memory_space<vmem>>, vector<8x128xf32>
    %15 = vector.shape_cast %12 : vector<16x128xf32> to vector<2x8x128xf32>
    %cst_8 = arith.constant dense<0.000000e+00> : vector<8x128xf32>
    %16 = vector.multi_reduction <add>, %15, %cst_8 [0] : vector<2x8x128xf32> to vector<8x128xf32>
    %17 = arith.addf %14, %16 : vector<8x128xf32>
    %c0_9 = arith.constant 0 : index
    %c0_10 = arith.constant 0 : index
    %18 = vector.load %arg5[%c0_9, %c0_10] : memref<8x128xf32, #tpu.memory_space<vmem>>, vector<8x128xf32>
    tpu.vector_store %arg5[%c0_9, %c0_10], %17 {strides = array<i32>} : memref<8x128xf32, #tpu.memory_space<vmem>>, vector<8x128xf32>,
    %c0_11 = arith.constant 0 : index
    %c0_12 = arith.constant 0 : index
    %19 = vector.load %arg6[%c0_11, %c0_12] : memref<8x128xf32, #tpu.memory_space<vmem>>, vector<8x128xf32>
    %20 = vector.shape_cast %13 : vector<16x128xf32> to vector<2x8x128xf32>
    %cst_13 = arith.constant dense<0.000000e+00> : vector<8x128xf32>
    %21 = vector.multi_reduction <add>, %20, %cst_13 [0] : vector<2x8x128xf32> to vector<8x128xf32>
    %22 = arith.addf %19, %21 : vector<8x128xf32>
    %c0_14 = arith.constant 0 : index
    %c0_15 = arith.constant 0 : index
    %23 = vector.load %arg6[%c0_14, %c0_15] : memref<8x128xf32, #tpu.memory_space<vmem>>, vector<8x128xf32>
    tpu.vector_store %arg6[%c0_14, %c0_15], %22 {strides = array<i32>} : memref<8x128xf32, #tpu.memory_space<vmem>>, vector<8x128xf32>,
    %c0_i32_16 = arith.constant 0 : i32
    %24 = arith.cmpi eq, %arg1, %c0_i32_16 : i32
    %25 = arith.extui %24 : i1 to i32
    %c0_i32_17 = arith.constant 0 : i32
    %26 = arith.cmpi ne, %25, %c0_i32_17 : i32
    scf.if %26 {
      %c0_18 = arith.constant 0 : index
      %c0_19 = arith.constant 0 : index
      %27 = vector.load %arg5[%c0_18, %c0_19] : memref<8x128xf32, #tpu.memory_space<vmem>>, vector<8x128xf32>
      %28 = vector.shape_cast %27 : vector<8x128xf32> to vector<1x8x128xf32>
      %cst_20 = arith.constant dense<0.000000e+00> : vector<1xf32>
      %29 = vector.multi_reduction <add>, %28, %cst_20 [1, 2] : vector<1x8x128xf32> to vector<1xf32>
      %30 = vector.shape_cast %29 : vector<1xf32> to vector<1x1x1xf32>
      %31 = vector.extract %30[0, 0, 0] : f32 from vector<1x1x1xf32>
      %c0_21 = arith.constant 0 : index
      %c0_22 = arith.constant 0 : index
      %32 = memref.load %arg4[%c0_21, %c0_22] : memref<1x2xf32, #tpu.memory_space<smem>>
      memref.store %31, %arg4[%c0_21, %c0_22] : memref<1x2xf32, #tpu.memory_space<smem>>
      %c0_23 = arith.constant 0 : index
      %c0_24 = arith.constant 0 : index
      %33 = vector.load %arg6[%c0_23, %c0_24] : memref<8x128xf32, #tpu.memory_space<vmem>>, vector<8x128xf32>
      %34 = vector.shape_cast %33 : vector<8x128xf32> to vector<1x8x128xf32>
      %cst_25 = arith.constant dense<0.000000e+00> : vector<1xf32>
      %35 = vector.multi_reduction <add>, %34, %cst_25 [1, 2] : vector<1x8x128xf32> to vector<1xf32>
      %36 = vector.shape_cast %35 : vector<1xf32> to vector<1x1x1xf32>
      %37 = vector.extract %36[0, 0, 0] : f32 from vector<1x1x1xf32>
      %c0_26 = arith.constant 0 : index
      %c1 = arith.constant 1 : index
      %38 = memref.load %arg4[%c0_26, %c1] : memref<1x2xf32, #tpu.memory_space<smem>>
      memref.store %37, %arg4[%c0_26, %c1] : memref<1x2xf32, #tpu.memory_space<smem>>
    } else {
    }
    return
  }
  func.func @transform_0(%arg0: i32, %arg1: i32) -> (i32, i32) {
    %c1_i32 = arith.constant 1 : i32
    %0 = arith.muli %arg0, %c1_i32 : i32
    %1 = arith.addi %0, %arg1 : i32
    %c0_i32 = arith.constant 0 : i32
    %2 = arith.minsi %1, %c0_i32 : i32
    %c0_i32_0 = arith.constant 0 : i32
    %c0_i32_1 = arith.constant 0 : i32
    return %2, %c0_i32_0 : i32, i32
  }
  func.func @transform_1(%arg0: i32, %arg1: i32) -> (i32, i32) {
    %c1_i32 = arith.constant 1 : i32
    %0 = arith.muli %arg0, %c1_i32 : i32
    %1 = arith.addi %0, %arg1 : i32
    %c0_i32 = arith.constant 0 : i32
    %2 = arith.minsi %1, %c0_i32 : i32
    %c0_i32_0 = arith.constant 0 : i32
    %c0_i32_1 = arith.constant 0 : i32
    return %2, %c0_i32_0 : i32, i32
  }
  func.func @transform_2(%arg0: i32, %arg1: i32) -> (i32, i32) {
    %c0_i32 = arith.constant 0 : i32
    %c0_i32_0 = arith.constant 0 : i32
    return %arg0, %c0_i32 : i32, i32
  }
}

</mosaic_0001>

<llo_original>
// kernel: dice_loss.1
$region0: #{dice_loss.1}
  #allocation0 [shape = 'u32[]', space=smem, size = 0x4, offset = 0x4, fixed_abs, tag = 'smem constant byte address 0x4 - core index']
  #allocation1 [shape = 'u32[144,128]{1,0:T(1,128)}', space=vmem, size = 0x12000, scoped, tag = 'internal scratch']
  #allocation2 [shape = 'f32[8,128]{1,0:T(8,128)}', space=vmem, size = 0x1000, scoped, tag = 'scratch operand']
  #allocation3 [shape = 'f32[8,128]{1,0:T(8,128)}', space=vmem, size = 0x1000, scoped, tag = 'scratch operand']
  %s0 = inlined_call_operand.vmem [shape: f32[16,128], index: 0, kind: input, shape index: {}]
  %s1 = inlined_call_operand.vmem [shape: f32[16,128], index: 1, kind: input, shape index: {}]
  %s2 = inlined_call_operand.vmem [shape: f32[1,2], index: 2, kind: output, shape index: {}]
  %s3 = sld [smem:[#allocation0]]
  $region26: #{dice_loss.1} parent=0
    _
  %s5 = ssub.s32 1, %s3
  %s6 = scalar_select 0, %s5, %s3
  $region1: #{dice_loss.1} parent=0
    #allocation4 [shape = 'u8[512]{0}', space=smem, size = 0x200, scoped, tag = 'output window, operand 0, single buffered']
    #allocation5 [shape = 's32[1]{0}', space=sflag, size = 0x4, scoped, tag = 'scoped memory for dice_loss.1']
    %7 = vsyncpa [#allocation5], 0
    // Predicated region
    $region2: #{dice_loss.1} parent=1 // pred_check
      _
    $region3: #{dice_loss.1} parent=1 // pred_check_branch
      %9 = sbr.rel (0) target = $region5
    $region4: #{dice_loss.1} parent=1 // pred_region
      %s10 = sadd.s32 0, 0
      %p11 = scmp.lt.s32.totalorder %s10, 0
      %s12 = scalar_select %p11, %s10, 0
      %s13 = smul.u32 2, %s12
      %p14 = scmp.lt.s32.totalorder %s13, 1
      %s15 = scalar_select %p14, %s13, 1
      %s16 = smul.addr %s15, 8
      %s17 = scalar_lea.vmem %s0, %s16
      %s18 = sadd.s32 0, 0
      %p19 = scmp.lt.s32.totalorder %s18, 0
      %s20 = scalar_select %p19, %s18, 0
      %s21 = smul.u32 2, %s20
    $region5: #{dice_loss.1} parent=1 // pred_fallthru
      _
    // Predicated region
    $region6: #{dice_loss.1} parent=1 // pred_check
      _
    $region7: #{dice_loss.1} parent=1 // pred_check_branch
      %23 = sbr.rel (0) target = $region9
    $region8: #{dice_loss.1} parent=1 // pred_region
      %s24 = sadd.s32 0, 0
      %p25 = scmp.lt.s32.totalorder %s24, 0
      %s26 = scalar_select %p25, %s24, 0
      %s27 = smul.u32 2, %s26
      %p28 = scmp.lt.s32.totalorder %s27, 1
      %s29 = scalar_select %p28, %s27, 1
      %s30 = smul.addr %s29, 8
      %s31 = scalar_lea.vmem %s1, %s30
      %s32 = sadd.s32 0, 0
      %p33 = scmp.lt.s32.totalorder %s32, 0
      %s34 = scalar_select %p33, %s32, 0
      %s35 = smul.u32 2, %s34
    $region9: #{dice_loss.1} parent=1 // pred_fallthru
      _
    %s36 = sadd.s32 0, 0
    %p37 = scmp.lt.s32.totalorder %s36, 0
    %s38 = scalar_select %p37, %s36, 0
    %s39 = smul.u32 2, %s38
    %p40 = scmp.lt.s32.totalorder %s39, 1
    %s41 = scalar_select %p40, %s39, 1
    %s42 = smul.addr %s41, 8
    %s43 = scalar_lea.vmem %s0, %s42
    %s44 = sadd.s32 0, 0
    %p45 = scmp.lt.s32.totalorder %s44, 0
    %s46 = scalar_select %p45, %s44, 0
    %s47 = smul.u32 2, %s46
    %p48 = scmp.lt.s32.totalorder %s47, 1
    %s49 = scalar_select %p48, %s47, 1
    %s50 = smul.addr %s49, 8
    %s51 = scalar_lea.vmem %s1, %s50
    %s52 = sadd.s32 0, 0
    %p53 = scmp.lt.s32.totalorder %s52, 0
    %s54 = scalar_select %p53, %s52, 0
    %s55 = smul.u32 2, %s54
    %p56 = scmp.lt.s32.totalorder %s55, 1
    %s57 = scalar_select %p56, %s55, 1
    %s58 = smul.addr %s57, 8
    %s59 = scalar_lea.vmem %s0, %s58
    %s60 = sadd.s32 0, 0
    %p61 = scmp.lt.s32.totalorder %s60, 0
    %s62 = scalar_select %p61, %s60, 0
    %s63 = smul.u32 2, %s62
    %s64 = sadd.s32 0, 0
    %p65 = scmp.lt.s32.totalorder %s64, 0
    %s66 = scalar_select %p65, %s64, 0
    %s67 = smul.u32 2, %s66
    %p68 = scmp.lt.s32.totalorder %s67, 1
    %s69 = scalar_select %p68, %s67, 1
    %s70 = smul.addr %s69, 8
    %s71 = scalar_lea.vmem %s1, %s70
    %s72 = sadd.s32 0, 0
    %p73 = scmp.lt.s32.totalorder %s72, 0
    %s74 = scalar_select %p73, %s72, 0
    %s75 = smul.u32 2, %s74
    %p76 = scmp.eq.s32.totalorder 0, 0
    // Predicated region
    $region10: #{dice_loss.1} parent=1 // pred_check
      %p77 = pneg %p76
    $region11: #{dice_loss.1} parent=1 // pred_check_branch
      %79 = sbr.rel (%p77) target = $region13
    $region12: #{dice_loss.1} parent=1 // pred_region
      %80 = vst [vmem:[#allocation2] sm:$0xff] 0.0
      %81 = vst [vmem:[#allocation3] sm:$0xff] 0.0
    $region13: #{dice_loss.1} parent=1 // pred_fallthru
      _
    %v82 = vld [vmem:[%s59] sm:$0xff]
    %v83 = vld [vmem:[%s59 + $0x8] sm:$0xff]
    %v84 = vld [vmem:[%s71] sm:$0xff]
    %v85 = vld [vmem:[%s71 + $0x8] sm:$0xff]
    %v86 = vmul.f32 %v82, 0.5
    %v87 = vmul.f32 %v83, 0.5
    %v88 = vtanh.pop %v86
    %v89 = vtanh.pop %v87
    %v90 = vadd.f32 %v88, 1.0
    %v91 = vadd.f32 %v89, 1.0
    %v92 = vmul.f32 %v90, 0.5
    %v93 = vmul.f32 %v91, 0.5
    %v94 = vmul.f32 %v92, %v84
    %v95 = vmul.f32 %v93, %v85
    %v96 = vadd.f32 %v92, %v84
    %v97 = vadd.f32 %v93, %v85
    %v98 = vld [vmem:[#allocation2] sm:$0xff]
    %v99 = vadd.f32 %v94, %v95
    %v100 = vadd.f32 %v98, %v99
    %101 = vst [vmem:[#allocation2] sm:$0xff] %v100
    %v102 = vld [vmem:[#allocation3] sm:$0xff]
    %v103 = vadd.f32 %v96, %v97
    %v104 = vadd.f32 %v102, %v103
    %105 = vst [vmem:[#allocation3] sm:$0xff] %v104
    // Predicated region
    $region14: #{dice_loss.1} parent=1 // pred_check
      %p106 = pneg %p76
    $region15: #{dice_loss.1} parent=1 // pred_check_branch
      %108 = sbr.rel (%p106) target = $region17
    $region16: #{dice_loss.1} parent=1 // pred_region
      %v109 = vld [vmem:[#allocation2] sm:$0xff]
      %110 = vadd.xlane.f32.xlu0 %v109
      %v111 = vpop.xlane.xlu0 %110
      %v112 = vrot.slane %v111, 4
      %v113 = vadd.f32 %v111, %v112
      %v114 = vrot.slane %v113, 2
      %v115 = vadd.f32 %v113, %v114
      %v116 = vrot.slane %v115, 1
      %v117 = vadd.f32 %v115, %v116
      %s118 = vtos %v117
      %s119 = scalar_lea.smem [#allocation4], 0
      %120 = sst [smem:[%s119]] %s118
      %v121 = vld [vmem:[#allocation3] sm:$0xff]
      %122 = vadd.xlane.f32.xlu0 %v121
      %v123 = vpop.xlane.xlu0 %122
      %v124 = vrot.slane %v123, 4
      %v125 = vadd.f32 %v123, %v124
      %v126 = vrot.slane %v125, 2
      %v127 = vadd.f32 %v125, %v126
      %v128 = vrot.slane %v127, 1
      %v129 = vadd.f32 %v127, %v128
      %s130 = vtos %v129
      %s131 = scalar_lea.smem [#allocation4], 1
      %132 = sst [smem:[%s131]] %s130
    $region17: #{dice_loss.1} parent=1 // pred_fallthru
      _
    // Predicated region
    $region18: #{dice_loss.1} parent=1 // pred_check
      _
    $region19: #{dice_loss.1} parent=1 // pred_check_branch
      %134 = sbr.rel (0) target = $region21
    $region20: #{dice_loss.1} parent=1 // pred_region
      %s136 = ssub.s32 16, 16
      %137 = vsyncadd [#allocation5], %s136
      %s139 = sshll.u32 %s2, 4
      %s140 = int_to_ptr.vmem [resolvable:$true] %s139
      %142 = dma.smem_to_vmem [#allocation4], 16, %s140, [#allocation5]
    $region21: #{dice_loss.1} parent=1 // pred_fallthru
      _
    // Predicated region
    $region22: #{dice_loss.1} parent=1 // pred_check
      _
    $region23: #{dice_loss.1} parent=1 // pred_check_branch
      %144 = sbr.rel (0) target = $region25
    $region24: #{dice_loss.1} parent=1 // pred_region
      %145 = dma.done [#allocation5], 16
    $region25: #{dice_loss.1} parent=1 // pred_fallthru
      _
    %146 = sfence
    %147 = vsyncpa [#allocation5], 1

</llo_original>
